<compile_context>
chip_gen: v7x
topology: tpu7x:2x2x1
jax: 0.10.0
libtpu: 0.0.40
codegen_flags: <defaults>
</compile_context>

<pallas_src>
import functools

import jax
import jax.numpy as jnp
from jax.experimental import pallas as pl
from jax.experimental.pallas import tpu as pltpu

BN_EPS = 1e-5


# ----------------------------------------------------------------------------
# Kernel 1: depthwise 3x3, stride 2, pad 1 (+ fused BN bias, optional ReLU)
#
# The wrapper pre-splits the padded input into 4 parity planes (space-to-depth
# by 2), so every tap (kh, kw) becomes a *contiguous* static slice of one plane:
#   y[i,j,c] = sum_{kh,kw} plane[kh%2, kw%2][i + kh//2, j + kw//2, c] * w[kh,kw,c]
# ----------------------------------------------------------------------------
def _dw_conv_bn_kernel(x_ref, w_ref, b_ref, o_ref, *, Ho, Wo, relu):
    C = o_ref.shape[-1]
    # 4 parity planes of shape (Ho+1, Wo+1, C), order: rh*2 + rw
    planes = [x_ref[p] for p in range(4)]
    w_all = w_ref[...].astype(jnp.float32)  # (3, 3, C), BN scale already folded in

    acc = jnp.zeros((Ho, Wo, C), jnp.float32)
    for kh in range(3):
        rh, dh = kh % 2, kh // 2
        for kw in range(3):
            rw, dw_off = kw % 2, kw // 2
            plane = planes[rh * 2 + rw]
            patch = plane[dh:dh + Ho, dw_off:dw_off + Wo, :].astype(jnp.float32)
            acc = acc + patch * w_all[kh, kw]

    y = acc + b_ref[0]
    if relu:
        y = jnp.maximum(y, 0.0)
    o_ref[0] = y.astype(o_ref.dtype)


def dw_conv_bn(x, w_hwc, scale, bias, *, relu=False):
    """x: (N,H,W,C) NHWC. Depthwise 3x3, stride 2, padding 1, fused BN (eval)."""
    N, H, W, C = x.shape
    Ho = (H + 2 - 3) // 2 + 1
    Wo = (W + 2 - 3) // 2 + 1
    Hp, Wp = 2 * Ho + 2, 2 * Wo + 2

    # TODO(synk): for production spatial sizes (e.g. 56x56x116), tile over output
    # rows as well (halo handled in-kernel) instead of padding + holding a full
    # image per grid step; this keeps VMEM bounded and removes the padded-copy
    # HBM round trip.
    xp = jnp.pad(x, ((0, 0), (1, Hp - 1 - H), (1, Wp - 1 - W), (0, 0)))
    # Space-to-depth by 2: (N, Hp, Wp, C) -> (N*4, Ho+1, Wo+1, C), plane = rh*2+rw
    xs = (xp.reshape(N, Ho + 1, 2, Wo + 1, 2, C)
            .transpose(0, 2, 4, 1, 3, 5)
            .reshape(N * 4, Ho + 1, Wo + 1, C))

    # Fold BN scale into the depthwise weights (linear), pass only the bias.
    w_f = (w_hwc.astype(jnp.float32) * scale.astype(jnp.float32)[None, None, :])
    b = bias.reshape(1, C).astype(jnp.float32)

    kern = functools.partial(_dw_conv_bn_kernel, Ho=Ho, Wo=Wo, relu=relu)
    return pl.pallas_call(
        kern,
        out_shape=jax.ShapeDtypeStruct((N, Ho, Wo, C), x.dtype),
        grid=(N,),
        in_specs=[
            pl.BlockSpec((4, Ho + 1, Wo + 1, C), lambda n: (n, 0, 0, 0)),
            pl.BlockSpec((3, 3, C), lambda n: (0, 0, 0)),
            pl.BlockSpec((1, C), lambda n: (0, 0)),
        ],
        out_specs=pl.BlockSpec((1, Ho, Wo, C), lambda n: (n, 0, 0, 0)),
        compiler_params=pltpu.CompilerParams(dimension_semantics=("parallel",)),
    )(xs, w_f, b)


# ----------------------------------------------------------------------------
# Kernel 2: 1x1 conv (matmul over channels) + fused BN bias (+ReLU),
#           tiled over M = N*H*W rows with a parallel grid axis.
# ----------------------------------------------------------------------------
def _pw_conv_bn_kernel(x_ref, w_ref, b_ref, o_ref, *, relu):
    y = jnp.dot(x_ref[...], w_ref[...], preferred_element_type=jnp.float32)
    y = y + b_ref[...]
    if relu:
        y = jnp.maximum(y, 0.0)
    o_ref[...] = y.astype(o_ref.dtype)


def _pick_tm(M, target=512):
    tm = min(target, M)
    # Expose >= 2 grid steps when possible (pipelining + v7x's second TC).
    if M // tm < 2 and M >= 16:
        tm = max(8, M // 2)
    return tm


def pw_conv_bn(x, w_io, scale, bias, *, relu=True):
    """x: (N,H,W,Cin) NHWC. 1x1 conv == (N*H*W,Cin) @ (Cin,Cout), fused BN (eval)."""
    N, H, W, Cin = x.shape
    Cout = w_io.shape[1]
    M = N * H * W
    x2 = x.reshape(M, Cin)

    tm = _pick_tm(M)
    grid_m = pl.cdiv(M, tm)

    # Fold BN scale into the 1x1 weights; keep operands in the activation dtype
    # (bf16-ready on v6e/v7x), accumulate in f32.
    w_f = (w_io.astype(jnp.float32) * scale.astype(jnp.float32)[None, :]).astype(x.dtype)
    b = bias.reshape(1, Cout).astype(jnp.float32)

    kern = functools.partial(_pw_conv_bn_kernel, relu=relu)
    out = pl.pallas_call(
        kern,
        out_shape=jax.ShapeDtypeStruct((M, Cout), x.dtype),
        grid=(grid_m,),
        in_specs=[
            pl.BlockSpec((tm, Cin), lambda i: (i, 0)),
            pl.BlockSpec((Cin, Cout), lambda i: (0, 0)),
            pl.BlockSpec((1, Cout), lambda i: (0, 0)),
        ],
        out_specs=pl.BlockSpec((tm, Cout), lambda i: (i, 0)),
        compiler_params=pltpu.CompilerParams(dimension_semantics=("parallel",)),
    )(x2, w_f, b)
    return out.reshape(N, H, W, Cout)


# ----------------------------------------------------------------------------
# Glue: BN folding, DownBlock forward, channel shuffle
# ----------------------------------------------------------------------------
def fold_bn(gamma, beta, mean, var, eps=BN_EPS):
    scale = gamma / jnp.sqrt(var + eps)
    return scale, beta - mean * scale


def down_block_forward(x_nchw, p):
    x = jnp.transpose(x_nchw, (0, 2, 3, 1))  # NCHW -> NHWC

    s1, b1 = fold_bn(*p["bn1"])
    s2, b2 = fold_bn(*p["bn2"])
    s3, b3 = fold_bn(*p["bn3"])
    s4, b4 = fold_bn(*p["bn4"])
    s5, b5 = fold_bn(*p["bn5"])

    # branch 1: dwconv(s2) -> bn1 ; 1x1 -> bn2 -> relu
    out1 = dw_conv_bn(x, p["w1_hwc"], s1, b1, relu=False)
    out1 = pw_conv_bn(out1, p["w2_io"], s2, b2, relu=True)

    # branch 2: 1x1 -> bn3 -> relu ; dwconv(s2) -> bn4 ; 1x1 -> bn5 -> relu
    out2 = pw_conv_bn(x, p["w3_io"], s3, b3, relu=True)
    out2 = dw_conv_bn(out2, p["w4_hwc"], s4, b4, relu=False)
    out2 = pw_conv_bn(out2, p["w5_io"], s5, b5, relu=True)

    # concat + channel shuffle (groups=2) == channel-wise interleave of the two
    # branches -> single cheap permutation, no intermediate concat materialized.
    N, Ho, Wo, mid = out1.shape
    out = jnp.stack([out1, out2], axis=-1).reshape(N, Ho, Wo, 2 * mid)

    return jnp.transpose(out, (0, 3, 1, 2))  # NHWC -> NCHW


# ----------------------------------------------------------------------------
# Pure-JAX (XLA conv) reference mirroring the PyTorch module, for verification
# ----------------------------------------------------------------------------
def ref_forward(x, p):
    def conv(x, w, stride, pad, groups):
        return jax.lax.conv_general_dilated(
            x, w, (stride, stride), ((pad, pad), (pad, pad)),
            feature_group_count=groups,
            dimension_numbers=("NCHW", "OIHW", "NCHW"),
        )

    def bn(x, prm):
        g, b, m, v = prm
        sh = (1, -1, 1, 1)
        return (x - m.reshape(sh)) / jnp.sqrt(v.reshape(sh) + BN_EPS) * g.reshape(sh) + b.reshape(sh)

    in_ch = x.shape[1]
    mid = p["w2_oihw"].shape[0]

    out1 = bn(conv(x, p["w1_oihw"], 2, 1, in_ch), p["bn1"])
    out1 = jax.nn.relu(bn(conv(out1, p["w2_oihw"], 1, 0, 1), p["bn2"]))

    out2 = jax.nn.relu(bn(conv(x, p["w3_oihw"], 1, 0, 1), p["bn3"]))
    out2 = bn(conv(out2, p["w4_oihw"], 2, 1, mid), p["bn4"])
    out2 = jax.nn.relu(bn(conv(out2, p["w5_oihw"], 1, 0, 1), p["bn5"]))

    out = jnp.concatenate([out1, out2], axis=1)
    N, C, H, W = out.shape
    out = out.reshape(N, 2, C // 2, H, W).transpose(0, 2, 1, 3, 4).reshape(N, C, H, W)
    return out


# ----------------------------------------------------------------------------
# Deterministic parameter construction + run
# ----------------------------------------------------------------------------
def make_params(key, in_channels, out_channels):
    mid = out_channels // 2
    keys = jax.random.split(key, 16)

    def bn_params(k, c):
        k1, k2, k3, k4 = jax.random.split(k, 4)
        gamma = 1.0 + 0.1 * jax.random.normal(k1, (c,), jnp.float32)
        beta = 0.1 * jax.random.normal(k2, (c,), jnp.float32)
        mean = 0.1 * jax.random.normal(k3, (c,), jnp.float32)
        var = jax.random.uniform(k4, (c,), jnp.float32, 0.5, 1.5)
        return (gamma, beta, mean, var)

    w1 = 0.5 * jax.random.normal(keys[0], (in_channels, 1, 3, 3), jnp.float32)
    w2 = 0.5 * jax.random.normal(keys[1], (mid, in_channels, 1, 1), jnp.float32)
    w3 = 0.5 * jax.random.normal(keys[2], (mid, in_channels, 1, 1), jnp.float32)
    w4 = 0.5 * jax.random.normal(keys[3], (mid, 1, 3, 3), jnp.float32)
    w5 = 0.5 * jax.random.normal(keys[4], (mid, mid, 1, 1), jnp.float32)

    p = {
        # PyTorch-layout weights (OIHW), used by the reference
        "w1_oihw": w1, "w2_oihw": w2, "w3_oihw": w3, "w4_oihw": w4, "w5_oihw": w5,
        # kernel-layout weights
        "w1_hwc": jnp.transpose(w1[:, 0], (1, 2, 0)),      # (3,3,Cin)
        "w2_io": w2[:, :, 0, 0].T,                          # (Cin,mid)
        "w3_io": w3[:, :, 0, 0].T,                          # (Cin,mid)
        "w4_hwc": jnp.transpose(w4[:, 0], (1, 2, 0)),       # (3,3,mid)
        "w5_io": w5[:, :, 0, 0].T,                          # (mid,mid)
        "bn1": bn_params(keys[5], in_channels),
        "bn2": bn_params(keys[6], mid),
        "bn3": bn_params(keys[7], mid),
        "bn4": bn_params(keys[8], mid),
        "bn5": bn_params(keys[9], mid),
    }
    return p


if __name__ == "__main__":
    N, C_in, H, W = 2, 4, 16, 16
    C_out = 8

    key = jax.random.PRNGKey(0)
    kx, kp = jax.random.split(key)
    x = jax.random.normal(kx, (N, C_in, H, W), jnp.float32)  # NCHW like PyTorch
    params = make_params(kp, C_in, C_out)

    out = down_block_forward(x, params)
    out = jax.block_until_ready(out)

    ref = jax.block_until_ready(ref_forward(x, params))
    assert out.shape == (N, C_out, H // 2, W // 2), out.shape
    assert jnp.allclose(out, ref, rtol=1e-4, atol=1e-4), float(jnp.max(jnp.abs(out - ref)))

    print("KERNEL_OK")
</pallas_src>

<mosaic_0001>
module attributes {stable_mosaic.version = 11 : i64} {
  func.func @_dw_conv_bn_kernel(%arg0: i32, %arg1: memref<4x9x9x4xf32, #tpu.memory_space<vmem>>, %arg2: memref<3x3x4xf32, #tpu.memory_space<vmem>>, %arg3: memref<1x4xf32, #tpu.memory_space<vmem>>, %arg4: memref<1x8x8x4xf32, #tpu.memory_space<vmem>>) attributes {dimension_semantics = [#tpu.dimension_semantics<parallel>], iteration_bounds = array<i64: 2>, scalar_prefetch = 0 : i64, scratch_operands = 0 : i64, tpu.core_type = #tpu.core_type<tc>, window_params = [{transform_indices = @transform_0, window_bounds = array<i64: 4, 9, 9, 4>}, {pipeline_mode = #tpu.pipeline_mode<synchronous>, transform_indices = @transform_1, window_bounds = array<i64: 3, 3, 4>}, {pipeline_mode = #tpu.pipeline_mode<synchronous>, transform_indices = @transform_2, window_bounds = array<i64: 1, 4>}, {transform_indices = @transform_3, window_bounds = array<i64: 1, 8, 8, 4>}]} {
    %c0 = arith.constant 0 : index
    %c0_0 = arith.constant 0 : index
    %c0_1 = arith.constant 0 : index
    %c0_2 = arith.constant 0 : index
    %0 = vector.load %arg1[%c0, %c0_0, %c0_1, %c0_2] : memref<4x9x9x4xf32, #tpu.memory_space<vmem>>, vector<1x9x9x4xf32>
    %1 = vector.shape_cast %0 : vector<1x9x9x4xf32> to vector<9x9x4xf32>
    %c1 = arith.constant 1 : index
    %c0_3 = arith.constant 0 : index
    %c0_4 = arith.constant 0 : index
    %c0_5 = arith.constant 0 : index
    %2 = vector.load %arg1[%c1, %c0_3, %c0_4, %c0_5] : memref<4x9x9x4xf32, #tpu.memory_space<vmem>>, vector<1x9x9x4xf32>
    %3 = vector.shape_cast %2 : vector<1x9x9x4xf32> to vector<9x9x4xf32>
    %c2 = arith.constant 2 : index
    %c0_6 = arith.constant 0 : index
    %c0_7 = arith.constant 0 : index
    %c0_8 = arith.constant 0 : index
    %4 = vector.load %arg1[%c2, %c0_6, %c0_7, %c0_8] : memref<4x9x9x4xf32, #tpu.memory_space<vmem>>, vector<1x9x9x4xf32>
    %5 = vector.shape_cast %4 : vector<1x9x9x4xf32> to vector<9x9x4xf32>
    %c3 = arith.constant 3 : index
    %c0_9 = arith.constant 0 : index
    %c0_10 = arith.constant 0 : index
    %c0_11 = arith.constant 0 : index
    %6 = vector.load %arg1[%c3, %c0_9, %c0_10, %c0_11] : memref<4x9x9x4xf32, #tpu.memory_space<vmem>>, vector<1x9x9x4xf32>
    %7 = vector.shape_cast %6 : vector<1x9x9x4xf32> to vector<9x9x4xf32>
    %c0_12 = arith.constant 0 : index
    %c0_13 = arith.constant 0 : index
    %c0_14 = arith.constant 0 : index
    %8 = vector.load %arg2[%c0_12, %c0_13, %c0_14] : memref<3x3x4xf32, #tpu.memory_space<vmem>>, vector<3x3x4xf32>
    %cst = arith.constant 0.000000e+00 : f32
    %9 = vector.broadcast %cst : f32 to vector<8x8x4xf32>
    %10 = vector.extract_strided_slice %1 {offsets = [0, 0, 0], sizes = [8, 8, 4], strides = [1, 1, 1]} : vector<9x9x4xf32> to vector<8x8x4xf32>
    %11 = vector.extract_strided_slice %8 {offsets = [0, 0, 0], sizes = [1, 1, 4], strides = [1, 1, 1]} : vector<3x3x4xf32> to vector<1x1x4xf32>
    %12 = vector.shape_cast %11 : vector<1x1x4xf32> to vector<4xf32>
    %13 = vector.shape_cast %12 : vector<4xf32> to vector<1x1x4xf32>
    %14 = vector.broadcast %13 : vector<1x1x4xf32> to vector<8x8x4xf32>
    %15 = arith.mulf %10, %14 : vector<8x8x4xf32>
    %16 = arith.addf %9, %15 : vector<8x8x4xf32>
    %17 = vector.extract_strided_slice %3 {offsets = [0, 0, 0], sizes = [8, 8, 4], strides = [1, 1, 1]} : vector<9x9x4xf32> to vector<8x8x4xf32>
    %18 = vector.extract_strided_slice %8 {offsets = [0, 1, 0], sizes = [1, 1, 4], strides = [1, 1, 1]} : vector<3x3x4xf32> to vector<1x1x4xf32>
    %19 = vector.shape_cast %18 : vector<1x1x4xf32> to vector<4xf32>
    %20 = vector.shape_cast %19 : vector<4xf32> to vector<1x1x4xf32>
    %21 = vector.broadcast %20 : vector<1x1x4xf32> to vector<8x8x4xf32>
    %22 = arith.mulf %17, %21 : vector<8x8x4xf32>
    %23 = arith.addf %16, %22 : vector<8x8x4xf32>
    %24 = vector.extract_strided_slice %1 {offsets = [0, 1, 0], sizes = [8, 8, 4], strides = [1, 1, 1]} : vector<9x9x4xf32> to vector<8x8x4xf32>
    %25 = vector.extract_strided_slice %8 {offsets = [0, 2, 0], sizes = [1, 1, 4], strides = [1, 1, 1]} : vector<3x3x4xf32> to vector<1x1x4xf32>
    %26 = vector.shape_cast %25 : vector<1x1x4xf32> to vector<4xf32>
    %27 = vector.shape_cast %26 : vector<4xf32> to vector<1x1x4xf32>
    %28 = vector.broadcast %27 : vector<1x1x4xf32> to vector<8x8x4xf32>
    %29 = arith.mulf %24, %28 : vector<8x8x4xf32>
    %30 = arith.addf %23, %29 : vector<8x8x4xf32>
    %31 = vector.extract_strided_slice %5 {offsets = [0, 0, 0], sizes = [8, 8, 4], strides = [1, 1, 1]} : vector<9x9x4xf32> to vector<8x8x4xf32>
    %32 = vector.extract_strided_slice %8 {offsets = [1, 0, 0], sizes = [1, 1, 4], strides = [1, 1, 1]} : vector<3x3x4xf32> to vector<1x1x4xf32>
    %33 = vector.shape_cast %32 : vector<1x1x4xf32> to vector<4xf32>
    %34 = vector.shape_cast %33 : vector<4xf32> to vector<1x1x4xf32>
    %35 = vector.broadcast %34 : vector<1x1x4xf32> to vector<8x8x4xf32>
    %36 = arith.mulf %31, %35 : vector<8x8x4xf32>
    %37 = arith.addf %30, %36 : vector<8x8x4xf32>
    %38 = vector.extract_strided_slice %7 {offsets = [0, 0, 0], sizes = [8, 8, 4], strides = [1, 1, 1]} : vector<9x9x4xf32> to vector<8x8x4xf32>
    %39 = vector.extract_strided_slice %8 {offsets = [1, 1, 0], sizes = [1, 1, 4], strides = [1, 1, 1]} : vector<3x3x4xf32> to vector<1x1x4xf32>
    %40 = vector.shape_cast %39 : vector<1x1x4xf32> to vector<4xf32>
    %41 = vector.shape_cast %40 : vector<4xf32> to vector<1x1x4xf32>
    %42 = vector.broadcast %41 : vector<1x1x4xf32> to vector<8x8x4xf32>
    %43 = arith.mulf %38, %42 : vector<8x8x4xf32>
    %44 = arith.addf %37, %43 : vector<8x8x4xf32>
    %45 = vector.extract_strided_slice %5 {offsets = [0, 1, 0], sizes = [8, 8, 4], strides = [1, 1, 1]} : vector<9x9x4xf32> to vector<8x8x4xf32>
    %46 = vector.extract_strided_slice %8 {offsets = [1, 2, 0], sizes = [1, 1, 4], strides = [1, 1, 1]} : vector<3x3x4xf32> to vector<1x1x4xf32>
    %47 = vector.shape_cast %46 : vector<1x1x4xf32> to vector<4xf32>
    %48 = vector.shape_cast %47 : vector<4xf32> to vector<1x1x4xf32>
    %49 = vector.broadcast %48 : vector<1x1x4xf32> to vector<8x8x4xf32>
    %50 = arith.mulf %45, %49 : vector<8x8x4xf32>
    %51 = arith.addf %44, %50 : vector<8x8x4xf32>
    %52 = vector.extract_strided_slice %1 {offsets = [1, 0, 0], sizes = [8, 8, 4], strides = [1, 1, 1]} : vector<9x9x4xf32> to vector<8x8x4xf32>
    %53 = vector.extract_strided_slice %8 {offsets = [2, 0, 0], sizes = [1, 1, 4], strides = [1, 1, 1]} : vector<3x3x4xf32> to vector<1x1x4xf32>
    %54 = vector.shape_cast %53 : vector<1x1x4xf32> to vector<4xf32>
    %55 = vector.shape_cast %54 : vector<4xf32> to vector<1x1x4xf32>
    %56 = vector.broadcast %55 : vector<1x1x4xf32> to vector<8x8x4xf32>
    %57 = arith.mulf %52, %56 : vector<8x8x4xf32>
    %58 = arith.addf %51, %57 : vector<8x8x4xf32>
    %59 = vector.extract_strided_slice %3 {offsets = [1, 0, 0], sizes = [8, 8, 4], strides = [1, 1, 1]} : vector<9x9x4xf32> to vector<8x8x4xf32>
    %60 = vector.extract_strided_slice %8 {offsets = [2, 1, 0], sizes = [1, 1, 4], strides = [1, 1, 1]} : vector<3x3x4xf32> to vector<1x1x4xf32>
    %61 = vector.shape_cast %60 : vector<1x1x4xf32> to vector<4xf32>
    %62 = vector.shape_cast %61 : vector<4xf32> to vector<1x1x4xf32>
    %63 = vector.broadcast %62 : vector<1x1x4xf32> to vector<8x8x4xf32>
    %64 = arith.mulf %59, %63 : vector<8x8x4xf32>
    %65 = arith.addf %58, %64 : vector<8x8x4xf32>
    %66 = vector.extract_strided_slice %1 {offsets = [1, 1, 0], sizes = [8, 8, 4], strides = [1, 1, 1]} : vector<9x9x4xf32> to vector<8x8x4xf32>
    %67 = vector.extract_strided_slice %8 {offsets = [2, 2, 0], sizes = [1, 1, 4], strides = [1, 1, 1]} : vector<3x3x4xf32> to vector<1x1x4xf32>
    %68 = vector.shape_cast %67 : vector<1x1x4xf32> to vector<4xf32>
    %69 = vector.shape_cast %68 : vector<4xf32> to vector<1x1x4xf32>
    %70 = vector.broadcast %69 : vector<1x1x4xf32> to vector<8x8x4xf32>
    %71 = arith.mulf %66, %70 : vector<8x8x4xf32>
    %72 = arith.addf %65, %71 : vector<8x8x4xf32>
    %c0_15 = arith.constant 0 : index
    %c0_16 = arith.constant 0 : index
    %73 = vector.load %arg3[%c0_15, %c0_16] : memref<1x4xf32, #tpu.memory_space<vmem>>, vector<1x4xf32>
    %74 = vector.shape_cast %73 : vector<1x4xf32> to vector<4xf32>
    %75 = vector.shape_cast %74 : vector<4xf32> to vector<1x1x4xf32>
    %76 = vector.broadcast %75 : vector<1x1x4xf32> to vector<8x8x4xf32>
    %77 = arith.addf %72, %76 : vector<8x8x4xf32>
    %c0_17 = arith.constant 0 : index
    %c0_18 = arith.constant 0 : index
    %c0_19 = arith.constant 0 : index
    %c0_20 = arith.constant 0 : index
    %78 = vector.load %arg4[%c0_17, %c0_18, %c0_19, %c0_20] : memref<1x8x8x4xf32, #tpu.memory_space<vmem>>, vector<1x8x8x4xf32>
    %79 = vector.shape_cast %78 : vector<1x8x8x4xf32> to vector<8x8x4xf32>
    %80 = vector.shape_cast %77 : vector<8x8x4xf32> to vector<1x8x8x4xf32>
    tpu.vector_store %arg4[%c0_17, %c0_18, %c0_19, %c0_20], %80 {strides = array<i32>} : memref<1x8x8x4xf32, #tpu.memory_space<vmem>>, vector<1x8x8x4xf32>,
    return
  }
  func.func @transform_0(%arg0: i32) -> (i32, i32, i32, i32) {
    %c0_i32 = arith.constant 0 : i32
    %c0_i32_0 = arith.constant 0 : i32
    %c0_i32_1 = arith.constant 0 : i32
    %c0_i32_2 = arith.constant 0 : i32
    return %arg0, %c0_i32, %c0_i32_0, %c0_i32_1 : i32, i32, i32, i32
  }
  func.func @transform_1(%arg0: i32) -> (i32, i32, i32) {
    %c0_i32 = arith.constant 0 : i32
    %c0_i32_0 = arith.constant 0 : i32
    %c0_i32_1 = arith.constant 0 : i32
    %c0_i32_2 = arith.constant 0 : i32
    return %c0_i32, %c0_i32_0, %c0_i32_1 : i32, i32, i32
  }
  func.func @transform_2(%arg0: i32) -> (i32, i32) {
    %c0_i32 = arith.constant 0 : i32
    %c0_i32_0 = arith.constant 0 : i32
    %c0_i32_1 = arith.constant 0 : i32
    return %c0_i32, %c0_i32_0 : i32, i32
  }
  func.func @transform_3(%arg0: i32) -> (i32, i32, i32, i32) {
    %c0_i32 = arith.constant 0 : i32
    %c0_i32_0 = arith.constant 0 : i32
    %c0_i32_1 = arith.constant 0 : i32
    %c0_i32_2 = arith.constant 0 : i32
    return %arg0, %c0_i32, %c0_i32_0, %c0_i32_1 : i32, i32, i32, i32
  }
}

</mosaic_0001>

<llo_original>
// kernel: tpu_custom_call.1
$region0: #{tpu_custom_call.1}
  #allocation0 [shape = 'u32[]', space=smem, size = 0x4, offset = 0x4, fixed_abs, tag = 'smem constant byte address 0x4 - core index']
  #allocation1 [shape = 'u32[144,128]{1,0:T(1,128)}', space=vmem, size = 0x12000, scoped, tag = 'internal scratch']
  %s0 = inlined_call_operand.vmem [shape: f32[8,9,9,4], index: 0, kind: input, shape index: {}]
  %s1 = inlined_call_operand.vmem [shape: f32[3,3,4], index: 1, kind: input, shape index: {}]
  %s2 = inlined_call_operand.vmem [shape: f32[1,4], index: 2, kind: input, shape index: {}]
  %s3 = inlined_call_operand.vmem [shape: f32[2,8,8,4], index: 3, kind: output, shape index: {}]
  %s4 = sld [smem:[#allocation0]]
  $region45: #{tpu_custom_call.1} parent=0
    _
  %s6 = ssub.s32 1, %s4
  %s7 = scalar_select 0, %s6, %s4
  loop: start=0, step=1, limit=4
  $region2: #{tpu_custom_call.1} parent=0 // loop_pre_header
    _
  $region3: #{tpu_custom_call.1} parent=0 // loop_header
    %s9 = sphi 0, %s13
    %p10 = scmp.ge.s32.totalorder %s9, 4
    %s19 = sphi 0, %s21
    %s22 = sphi 0, %s19
    %s23 = sphi 0, %s22
    %s39 = sphi 0, %s23
    %s43 = sphi 0, %s43
    %s45 = sphi 0, %s43
    %s46 = sphi 0, %s45
    %s60 = sphi 0, %s46
    %s64 = sphi 0, %s64
    %s66 = sphi 0, %s64
    %s67 = sphi 0, %s66
    %s81 = sphi 0, %s67
    %s87 = sphi 0, %s89
    %s90 = sphi 0, %s87
    %s91 = sphi 0, %s90
    %s107 = sphi 0, %s91
  $region4: #{tpu_custom_call.1} parent=0 // loop_header_branch
    %12 = sbr.rel (%p10) target = $region8
  $region5: #{tpu_custom_call.1} parent=0 // loop_body
    %s14 = ssub.s32 %s9, 1
    %s15 = ssub.s32 %s9, 2
    %s16 = sadd.s32 %s9, 1
    %s17 = ssub.s32 %s9, %s16
    %p18 = scmp.eq.s32.totalorder %s17, 0
    %s20 = sadd.s32 %s19, 1
    %s21 = scalar_select %p18, %s19, %s20
    %p24 = pneg %p18
    %p25 = scmp.eq.s32.totalorder %s9, 1
    %p26 = por %p24, %p25
    %p27 = scmp.ne.s32.totalorder %s19, %s22
    %p28 = scmp.eq.s32.totalorder %s9, 0
    %p29 = por %p27, %p28
    %p30 = scmp.ne.s32.totalorder %s19, %s22
    %p31 = scmp.eq.s32.totalorder %s14, 1
    %p32 = por %p30, %p31
    %p33 = scmp.ne.s32.totalorder %s22, %s23
    %p34 = scmp.eq.s32.totalorder %s14, 0
    %p35 = por %p33, %p34
    %p36 = scmp.ne.s32.totalorder %s22, %s23
    %p37 = scmp.eq.s32.totalorder %s15, 1
    %p38 = por %p36, %p37
    %p40 = scmp.ne.s32.totalorder %s23, %s39
    %p41 = scmp.eq.s32.totalorder %s15, 0
    %p42 = por %p40, %p41
    %s44 = sadd.s32 %s43, 1
    %p47 = scmp.eq.s32.totalorder %s9, 1
    %p48 = scmp.ne.s32.totalorder %s43, %s45
    %p49 = scmp.eq.s32.totalorder %s9, 0
    %p50 = por %p48, %p49
    %p51 = scmp.ne.s32.totalorder %s43, %s45
    %p52 = scmp.eq.s32.totalorder %s14, 1
    %p53 = por %p51, %p52
    %p54 = scmp.ne.s32.totalorder %s45, %s46
    %p55 = scmp.eq.s32.totalorder %s14, 0
    %p56 = por %p54, %p55
    %p57 = scmp.ne.s32.totalorder %s45, %s46
    %p58 = scmp.eq.s32.totalorder %s15, 1
    %p59 = por %p57, %p58
    %p61 = scmp.ne.s32.totalorder %s46, %s60
    %p62 = scmp.eq.s32.totalorder %s15, 0
    %p63 = por %p61, %p62
    %s65 = sadd.s32 %s64, 1
    %p68 = scmp.eq.s32.totalorder %s9, 1
    %p69 = scmp.ne.s32.totalorder %s64, %s66
    %p70 = scmp.eq.s32.totalorder %s9, 0
    %p71 = por %p69, %p70
    %p72 = scmp.ne.s32.totalorder %s64, %s66
    %p73 = scmp.eq.s32.totalorder %s14, 1
    %p74 = por %p72, %p73
    %p75 = scmp.ne.s32.totalorder %s66, %s67
    %p76 = scmp.eq.s32.totalorder %s14, 0
    %p77 = por %p75, %p76
    %p78 = scmp.ne.s32.totalorder %s66, %s67
    %p79 = scmp.eq.s32.totalorder %s15, 1
    %p80 = por %p78, %p79
    %p82 = scmp.ne.s32.totalorder %s67, %s81
    %p83 = scmp.eq.s32.totalorder %s15, 0
    %p84 = por %p82, %p83
    %s85 = ssub.s32 %s9, %s16
    %p86 = scmp.eq.s32.totalorder %s85, 0
    %s88 = sadd.s32 %s87, 1
    %s89 = scalar_select %p86, %s87, %s88
    %p92 = pneg %p86
    %p93 = scmp.eq.s32.totalorder %s9, 1
    %p94 = por %p92, %p93
    %p95 = scmp.ne.s32.totalorder %s87, %s90
    %p96 = scmp.eq.s32.totalorder %s9, 0
    %p97 = por %p95, %p96
    %p98 = scmp.ne.s32.totalorder %s87, %s90
    %p99 = scmp.eq.s32.totalorder %s14, 1
    %p100 = por %p98, %p99
    %p101 = scmp.ne.s32.totalorder %s90, %s91
    %p102 = scmp.eq.s32.totalorder %s14, 0
    %p103 = por %p101, %p102
    %p104 = scmp.ne.s32.totalorder %s90, %s91
    %p105 = scmp.eq.s32.totalorder %s15, 1
    %p106 = por %p104, %p105
    %p108 = scmp.ne.s32.totalorder %s91, %s107
    %p109 = scmp.eq.s32.totalorder %s15, 0
    %p110 = por %p108, %p109
    %p111 = scmp.le.s32.totalorder 1, %s9
    %p112 = scmp.lt.s32.totalorder %s9, 3
    %p113 = pnand %p111, %p112
    %p114 = pneg %p113
    // Predicated region
    $region9: #{tpu_custom_call.1} parent=5 // pred_check
      _
    $region10: #{tpu_custom_call.1} parent=5 // pred_check_branch
      %116 = sbr.rel (%p113) target = $region12
    $region11: #{tpu_custom_call.1} parent=5 // pred_region
      %s117 = ssub.s32 %s9, 1
      // Predicated region
      $region13: #{tpu_custom_call.1} parent=11 // pred_check
        %p118 = pneg %p56
      $region14: #{tpu_custom_call.1} parent=11 // pred_check_branch
        %120 = sbr.rel (%p118) target = $region16
      $region15: #{tpu_custom_call.1} parent=11 // pred_region
        _
      $region16: #{tpu_custom_call.1} parent=11 // pred_fallthru
        _
      // Predicated region
      $region17: #{tpu_custom_call.1} parent=11 // pred_check
        %p121 = pneg %p77
      $region18: #{tpu_custom_call.1} parent=11 // pred_check_branch
        %123 = sbr.rel (%p121) target = $region20
      $region19: #{tpu_custom_call.1} parent=11 // pred_region
        _
      $region20: #{tpu_custom_call.1} parent=11 // pred_fallthru
        _
    $region12: #{tpu_custom_call.1} parent=5 // pred_fallthru
      _
    %p124 = scmp.lt.s32.totalorder %s9, 2
    // Predicated region
    $region21: #{tpu_custom_call.1} parent=5 // pred_check
      %p125 = pneg %p124
    $region22: #{tpu_custom_call.1} parent=5 // pred_check_branch
      %127 = sbr.rel (%p125) target = $region24
    $region23: #{tpu_custom_call.1} parent=5 // pred_region
      // Predicated region
      $region25: #{tpu_custom_call.1} parent=23 // pred_check
        %p128 = pneg %p29
      $region26: #{tpu_custom_call.1} parent=23 // pred_check_branch
        %130 = sbr.rel (%p128) target = $region28
      $region27: #{tpu_custom_call.1} parent=23 // pred_region
        %s131 = smul.u32 4, %s9
        %p132 = scmp.lt.s32.totalorder %s131, 7
        %s133 = scalar_select %p132, %s131, 7
        %s134 = smul.addr %s133, 18
        %s135 = smul.addr %s134, 8
        %s136 = scalar_lea.vmem %s0, %s135
        %s137 = smul.u32 4, %s9
      $region28: #{tpu_custom_call.1} parent=23 // pred_fallthru
        _
    $region24: #{tpu_custom_call.1} parent=5 // pred_fallthru
      _
    %p138 = scmp.le.s32.totalorder 1, %s9
    %p139 = scmp.lt.s32.totalorder %s9, 3
    %p140 = pnand %p138, %p139
    %p141 = pneg %p140
    // Predicated region
    $region29: #{tpu_custom_call.1} parent=5 // pred_check
      _
    $region30: #{tpu_custom_call.1} parent=5 // pred_check_branch
      %143 = sbr.rel (%p140) target = $region32
    $region31: #{tpu_custom_call.1} parent=5 // pred_region
      %s144 = ssub.s32 %s9, 1
      %s145 = smul.u32 4, %s14
      %p146 = scmp.lt.s32.totalorder %s145, 7
      %s147 = scalar_select %p146, %s145, 7
      %s148 = smul.addr %s147, 18
      %s149 = smul.addr %s148, 8
      %s150 = scalar_lea.vmem %s0, %s149
      %p151 = pneg %p35
      %p152 = pneg %p32
      %p153 = pneg %p56
      %p154 = pneg %p53
      %p155 = pneg %p77
      %p156 = pneg %p74
      %p157 = pneg %p103
      %p158 = pneg %p100
      %p159 = scmp.lt.s32.totalorder %s14, 1
      %s160 = scalar_select %p159, %s14, 1
      %s161 = smul.addr %s160, 8
      %s162 = smul.addr %s161, 8
      %s163 = scalar_lea.vmem %s3, %s162
      %s164 = smul.u32 4, %s14
      %p165 = scmp.lt.s32.totalorder %s164, 7
      %s166 = scalar_select %p165, %s164, 7
      %s167 = smul.addr %s166, 18
      %s168 = smul.addr %s167, 8
      %s169 = scalar_lea.vmem %s0, %s168
      %s170 = smul.u32 4, %s14
      %p171 = scmp.lt.s32.totalorder %s14, 1
      %s172 = scalar_select %p171, %s14, 1
      %s173 = smul.addr %s172, 8
      %s174 = smul.addr %s173, 8
      %s175 = scalar_lea.vmem %s3, %s174
      %v176 = vld [vmem:[%s169] sm:$0xff]
      %v177 = vld [vmem:[%s169 + $0x8] sm:$0x1]
      %v178 = vld [vmem:[%s169 + $0x10] sm:$0xff]
      %v179 = vld [vmem:[%s169 + $0x18] sm:$0x1]
      %v180 = vld [vmem:[%s169 + $0x20] sm:$0xff]
      %v181 = vld [vmem:[%s169 + $0x28] sm:$0x1]
      %v182 = vld [vmem:[%s169 + $0x30] sm:$0xff]
      %v183 = vld [vmem:[%s169 + $0x38] sm:$0x1]
      %v184 = vld [vmem:[%s169 + $0x40] sm:$0xff]
      %v185 = vld [vmem:[%s169 + $0x48] sm:$0x1]
      %v186 = vld [vmem:[%s169 + $0x50] sm:$0xff]
      %v187 = vld [vmem:[%s169 + $0x58] sm:$0x1]
      %v188 = vld [vmem:[%s169 + $0x60] sm:$0xff]
      %v189 = vld [vmem:[%s169 + $0x68] sm:$0x1]
      %v190 = vld [vmem:[%s169 + $0x70] sm:$0xff]
      %v191 = vld [vmem:[%s169 + $0x78] sm:$0x1]
      %v192 = vld [vmem:[%s169 + $0x80] sm:$0xff]
      %v193 = vld [vmem:[%s169 + $0x88] sm:$0x1]
      %s194 = scalar_lea.vmem %s169, 144
      %v195 = vld [vmem:[%s194] sm:$0xff]
      %v196 = vld [vmem:[%s194 + $0x10] sm:$0xff]
      %v197 = vld [vmem:[%s194 + $0x20] sm:$0xff]
      %v198 = vld [vmem:[%s194 + $0x30] sm:$0xff]
      %v199 = vld [vmem:[%s194 + $0x40] sm:$0xff]
      %v200 = vld [vmem:[%s194 + $0x50] sm:$0xff]
      %v201 = vld [vmem:[%s194 + $0x60] sm:$0xff]
      %v202 = vld [vmem:[%s194 + $0x70] sm:$0xff]
      %v203 = vld [vmem:[%s194 + $0x80] sm:$0xff]
      %s204 = scalar_lea.vmem %s169, 288
      %v205 = vld [vmem:[%s204] sm:$0xff]
      %v206 = vld [vmem:[%s204 + $0x8] sm:$0x1]
      %v207 = vld [vmem:[%s204 + $0x10] sm:$0xff]
      %v208 = vld [vmem:[%s204 + $0x18] sm:$0x1]
      %v209 = vld [vmem:[%s204 + $0x20] sm:$0xff]
      %v210 = vld [vmem:[%s204 + $0x28] sm:$0x1]
      %v211 = vld [vmem:[%s204 + $0x30] sm:$0xff]
      %v212 = vld [vmem:[%s204 + $0x38] sm:$0x1]
      %v213 = vld [vmem:[%s204 + $0x40] sm:$0xff]
      %v214 = vld [vmem:[%s204 + $0x48] sm:$0x1]
      %v215 = vld [vmem:[%s204 + $0x50] sm:$0xff]
      %v216 = vld [vmem:[%s204 + $0x58] sm:$0x1]
      %v217 = vld [vmem:[%s204 + $0x60] sm:$0xff]
      %v218 = vld [vmem:[%s204 + $0x68] sm:$0x1]
      %v219 = vld [vmem:[%s204 + $0x70] sm:$0xff]
      %v220 = vld [vmem:[%s204 + $0x78] sm:$0x1]
      %s221 = scalar_lea.vmem %s169, 432
      %v222 = vld [vmem:[%s221] sm:$0xff]
      %v223 = vld [vmem:[%s221 + $0x10] sm:$0xff]
      %v224 = vld [vmem:[%s221 + $0x20] sm:$0xff]
      %v225 = vld [vmem:[%s221 + $0x30] sm:$0xff]
      %v226 = vld [vmem:[%s221 + $0x40] sm:$0xff]
      %v227 = vld [vmem:[%s221 + $0x50] sm:$0xff]
      %v228 = vld [vmem:[%s221 + $0x60] sm:$0xff]
      %v229 = vld [vmem:[%s221 + $0x70] sm:$0xff]
      %v230 = vld [vmem:[%s1] sm:$0x7]
      %v231 = vld [vmem:[%s1 + $0x4] sm:$0x7]
      %v232 = vld [vmem:[%s1 + $0x8] sm:$0x7]
      %v233 = vlaneseq
      %v234 = vshrl.u32 %v233, 7
      %v235 = vsub.s32 0, %v234
      %v236 = vrot.slane %v230, %v235
      %v237 = vmul.f32 %v176, %v236
      %v238 = vmul.f32 %v178, %v236
      %v239 = vmul.f32 %v180, %v236
      %v240 = vmul.f32 %v182, %v236
      %v241 = vmul.f32 %v184, %v236
      %v242 = vmul.f32 %v186, %v236
      %v243 = vmul.f32 %v188, %v236
      %v244 = vmul.f32 %v190, %v236
      %v245 = vadd.f32 %v237, 0.0
      %v246 = vadd.f32 %v238, 0.0
      %v247 = vadd.f32 %v239, 0.0
      %v248 = vadd.f32 %v240, 0.0
      %v249 = vadd.f32 %v241, 0.0
      %v250 = vadd.f32 %v242, 0.0
      %v251 = vadd.f32 %v243, 0.0
      %v252 = vadd.f32 %v244, 0.0
      %v253 = vlaneseq
      %v254 = vshrl.u32 %v253, 7
      %v255 = vsub.s32 1, %v254
      %v256 = vrot.slane %v230, %v255
      %v257 = vmul.f32 %v195, %v256
      %v258 = vmul.f32 %v196, %v256
      %v259 = vmul.f32 %v197, %v256
      %v260 = vmul.f32 %v198, %v256
      %v261 = vmul.f32 %v199, %v256
      %v262 = vmul.f32 %v200, %v256
      %v263 = vmul.f32 %v201, %v256
      %v264 = vmul.f32 %v202, %v256
      %v265 = vadd.f32 %v245, %v257
      %v266 = vadd.f32 %v246, %v258
      %v267 = vadd.f32 %v247, %v259
      %v268 = vadd.f32 %v248, %v260
      %v269 = vadd.f32 %v249, %v261
      %v270 = vadd.f32 %v250, %v262
      %v271 = vadd.f32 %v251, %v263
      %v272 = vadd.f32 %v252, %v264
      %v273 = vlaneseq
      %v274 = vshrl.u32 %v273, 7
      %v275 = vsub.s32 2, %v274
      %v276 = vrot.slane %v230, %v275
      %v277 = vmul.f32 %v176, %v276
      %v278 = vmul.f32 %v177, %v276
      %v279 = vmul.f32 %v178, %v276
      %v280 = vmul.f32 %v179, %v276
      %v281 = vmul.f32 %v180, %v276
      %v282 = vmul.f32 %v181, %v276
      %v283 = vmul.f32 %v182, %v276
      %v284 = vmul.f32 %v183, %v276
      %v285 = vmul.f32 %v184, %v276
      %v286 = vmul.f32 %v185, %v276
      %v287 = vmul.f32 %v186, %v276
      %v288 = vmul.f32 %v187, %v276
      %v289 = vmul.f32 %v188, %v276
      %v290 = vmul.f32 %v189, %v276
      %v291 = vmul.f32 %v190, %v276
      %v292 = vmul.f32 %v191, %v276
      %vm309 = vcmask 1046528
      %v310 = vrot.slane %v277, 1
      %v311 = vrot.slane %v278, 1
      %v312 = vsel %vm309, %v310, %v311
      %v313 = vrot.slane %v279, 1
      %v314 = vrot.slane %v280, 1
      %v315 = vsel %vm309, %v313, %v314
      %v316 = vrot.slane %v281, 1
      %v317 = vrot.slane %v282, 1
      %v318 = vsel %vm309, %v316, %v317
      %v319 = vrot.slane %v283, 1
      %v320 = vrot.slane %v284, 1
      %v321 = vsel %vm309, %v319, %v320
      %v322 = vrot.slane %v285, 1
      %v323 = vrot.slane %v286, 1
      %v324 = vsel %vm309, %v322, %v323
      %v325 = vrot.slane %v287, 1
      %v326 = vrot.slane %v288, 1
      %v327 = vsel %vm309, %v325, %v326
      %v328 = vrot.slane %v289, 1
      %v329 = vrot.slane %v290, 1
      %v330 = vsel %vm309, %v328, %v329
      %v331 = vrot.slane %v291, 1
      %v332 = vrot.slane %v292, 1
      %v333 = vsel %vm309, %v331, %v332
      %v342 = vadd.f32 %v265, %v312
      %v343 = vadd.f32 %v266, %v315
      %v344 = vadd.f32 %v267, %v318
      %v345 = vadd.f32 %v268, %v321
      %v346 = vadd.f32 %v269, %v324
      %v347 = vadd.f32 %v270, %v327
      %v348 = vadd.f32 %v271, %v330
      %v349 = vadd.f32 %v272, %v333
      %v350 = vlaneseq
      %v351 = vshrl.u32 %v350, 7
      %v352 = vsub.s32 0, %v351
      %v353 = vrot.slane %v231, %v352
      %v354 = vmul.f32 %v205, %v353
      %v355 = vmul.f32 %v207, %v353
      %v356 = vmul.f32 %v209, %v353
      %v357 = vmul.f32 %v211, %v353
      %v358 = vmul.f32 %v213, %v353
      %v359 = vmul.f32 %v215, %v353
      %v360 = vmul.f32 %v217, %v353
      %v361 = vmul.f32 %v219, %v353
      %v362 = vadd.f32 %v342, %v354
      %v363 = vadd.f32 %v343, %v355
      %v364 = vadd.f32 %v344, %v356
      %v365 = vadd.f32 %v345, %v357
      %v366 = vadd.f32 %v346, %v358
      %v367 = vadd.f32 %v347, %v359
      %v368 = vadd.f32 %v348, %v360
      %v369 = vadd.f32 %v349, %v361
      %v370 = vlaneseq
      %v371 = vshrl.u32 %v370, 7
      %v372 = vsub.s32 1, %v371
      %v373 = vrot.slane %v231, %v372
      %v374 = vmul.f32 %v222, %v373
      %v375 = vmul.f32 %v223, %v373
      %v376 = vmul.f32 %v224, %v373
      %v377 = vmul.f32 %v225, %v373
      %v378 = vmul.f32 %v226, %v373
      %v379 = vmul.f32 %v227, %v373
      %v380 = vmul.f32 %v228, %v373
      %v381 = vmul.f32 %v229, %v373
      %v382 = vadd.f32 %v362, %v374
      %v383 = vadd.f32 %v363, %v375
      %v384 = vadd.f32 %v364, %v376
      %v385 = vadd.f32 %v365, %v377
      %v386 = vadd.f32 %v366, %v378
      %v387 = vadd.f32 %v367, %v379
      %v388 = vadd.f32 %v368, %v380
      %v389 = vadd.f32 %v369, %v381
      %v390 = vlaneseq
      %v391 = vshrl.u32 %v390, 7
      %v392 = vsub.s32 2, %v391
      %v393 = vrot.slane %v231, %v392
      %v394 = vmul.f32 %v205, %v393
      %v395 = vmul.f32 %v206, %v393
      %v396 = vmul.f32 %v207, %v393
      %v397 = vmul.f32 %v208, %v393
      %v398 = vmul.f32 %v209, %v393
      %v399 = vmul.f32 %v210, %v393
      %v400 = vmul.f32 %v211, %v393
      %v401 = vmul.f32 %v212, %v393
      %v402 = vmul.f32 %v213, %v393
      %v403 = vmul.f32 %v214, %v393
      %v404 = vmul.f32 %v215, %v393
      %v405 = vmul.f32 %v216, %v393
      %v406 = vmul.f32 %v217, %v393
      %v407 = vmul.f32 %v218, %v393
      %v408 = vmul.f32 %v219, %v393
      %v409 = vmul.f32 %v220, %v393
      %v426 = vrot.slane %v394, 1
      %v427 = vrot.slane %v395, 1
      %v428 = vsel %vm309, %v426, %v427
      %v429 = vrot.slane %v396, 1
      %v430 = vrot.slane %v397, 1
      %v431 = vsel %vm309, %v429, %v430
      %v432 = vrot.slane %v398, 1
      %v433 = vrot.slane %v399, 1
      %v434 = vsel %vm309, %v432, %v433
      %v435 = vrot.slane %v400, 1
      %v436 = vrot.slane %v401, 1
      %v437 = vsel %vm309, %v435, %v436
      %v438 = vrot.slane %v402, 1
      %v439 = vrot.slane %v403, 1
      %v440 = vsel %vm309, %v438, %v439
      %v441 = vrot.slane %v404, 1
      %v442 = vrot.slane %v405, 1
      %v443 = vsel %vm309, %v441, %v442
      %v444 = vrot.slane %v406, 1
      %v445 = vrot.slane %v407, 1
      %v446 = vsel %vm309, %v444, %v445
      %v447 = vrot.slane %v408, 1
      %v448 = vrot.slane %v409, 1
      %v449 = vsel %vm309, %v447, %v448
      %v458 = vadd.f32 %v382, %v428
      %v459 = vadd.f32 %v383, %v431
      %v460 = vadd.f32 %v384, %v434
      %v461 = vadd.f32 %v385, %v437
      %v462 = vadd.f32 %v386, %v440
      %v463 = vadd.f32 %v387, %v443
      %v464 = vadd.f32 %v388, %v446
      %v465 = vadd.f32 %v389, %v449
      %v466 = vlaneseq
      %v467 = vshrl.u32 %v466, 7
      %v468 = vsub.s32 0, %v467
      %v469 = vrot.slane %v232, %v468
      %v470 = vmul.f32 %v178, %v469
      %v471 = vmul.f32 %v180, %v469
      %v472 = vmul.f32 %v182, %v469
      %v473 = vmul.f32 %v184, %v469
      %v474 = vmul.f32 %v186, %v469
      %v475 = vmul.f32 %v188, %v469
      %v476 = vmul.f32 %v190, %v469
      %v477 = vmul.f32 %v192, %v469
      %v478 = vadd.f32 %v458, %v470
      %v479 = vadd.f32 %v459, %v471
      %v480 = vadd.f32 %v460, %v472
      %v481 = vadd.f32 %v461, %v473
      %v482 = vadd.f32 %v462, %v474
      %v483 = vadd.f32 %v463, %v475
      %v484 = vadd.f32 %v464, %v476
      %v485 = vadd.f32 %v465, %v477
      %v486 = vlaneseq
      %v487 = vshrl.u32 %v486, 7
      %v488 = vsub.s32 1, %v487
      %v489 = vrot.slane %v232, %v488
      %v490 = vmul.f32 %v196, %v489
      %v491 = vmul.f32 %v197, %v489
      %v492 = vmul.f32 %v198, %v489
      %v493 = vmul.f32 %v199, %v489
      %v494 = vmul.f32 %v200, %v489
      %v495 = vmul.f32 %v201, %v489
      %v496 = vmul.f32 %v202, %v489
      %v497 = vmul.f32 %v203, %v489
      %v498 = vadd.f32 %v478, %v490
      %v499 = vadd.f32 %v479, %v491
      %v500 = vadd.f32 %v480, %v492
      %v501 = vadd.f32 %v481, %v493
      %v502 = vadd.f32 %v482, %v494
      %v503 = vadd.f32 %v483, %v495
      %v504 = vadd.f32 %v484, %v496
      %v505 = vadd.f32 %v485, %v497
      %v506 = vlaneseq
      %v507 = vshrl.u32 %v506, 7
      %v508 = vsub.s32 2, %v507
      %v509 = vrot.slane %v232, %v508
      %v510 = vmul.f32 %v178, %v509
      %v511 = vmul.f32 %v179, %v509
      %v512 = vmul.f32 %v180, %v509
      %v513 = vmul.f32 %v181, %v509
      %v514 = vmul.f32 %v182, %v509
      %v515 = vmul.f32 %v183, %v509
      %v516 = vmul.f32 %v184, %v509
      %v517 = vmul.f32 %v185, %v509
      %v518 = vmul.f32 %v186, %v509
      %v519 = vmul.f32 %v187, %v509
      %v520 = vmul.f32 %v188, %v509
      %v521 = vmul.f32 %v189, %v509
      %v522 = vmul.f32 %v190, %v509
      %v523 = vmul.f32 %v191, %v509
      %v524 = vmul.f32 %v192, %v509
      %v525 = vmul.f32 %v193, %v509
      %v542 = vrot.slane %v510, 1
      %v543 = vrot.slane %v511, 1
      %v544 = vsel %vm309, %v542, %v543
      %v545 = vrot.slane %v512, 1
      %v546 = vrot.slane %v513, 1
      %v547 = vsel %vm309, %v545, %v546
      %v548 = vrot.slane %v514, 1
      %v549 = vrot.slane %v515, 1
      %v550 = vsel %vm309, %v548, %v549
      %v551 = vrot.slane %v516, 1
      %v552 = vrot.slane %v517, 1
      %v553 = vsel %vm309, %v551, %v552
      %v554 = vrot.slane %v518, 1
      %v555 = vrot.slane %v519, 1
      %v556 = vsel %vm309, %v554, %v555
      %v557 = vrot.slane %v520, 1
      %v558 = vrot.slane %v521, 1
      %v559 = vsel %vm309, %v557, %v558
      %v560 = vrot.slane %v522, 1
      %v561 = vrot.slane %v523, 1
      %v562 = vsel %vm309, %v560, %v561
      %v563 = vrot.slane %v524, 1
      %v564 = vrot.slane %v525, 1
      %v565 = vsel %vm309, %v563, %v564
      %v574 = vadd.f32 %v498, %v544
      %v575 = vadd.f32 %v499, %v547
      %v576 = vadd.f32 %v500, %v550
      %v577 = vadd.f32 %v501, %v553
      %v578 = vadd.f32 %v502, %v556
      %v579 = vadd.f32 %v503, %v559
      %v580 = vadd.f32 %v504, %v562
      %v581 = vadd.f32 %v505, %v565
      %v582 = vld [vmem:[%s2] sm:$0x1]
      %v584 = vlaneseq
      %v585 = vshrl.u32 %v584, 7
      %v586 = vsub.s32 0, %v585
      %v587 = vrot.slane %v582, %v586
      %v589 = vadd.f32 %v574, %v587
      %v590 = vadd.f32 %v575, %v587
      %v591 = vadd.f32 %v576, %v587
      %v592 = vadd.f32 %v577, %v587
      %v593 = vadd.f32 %v578, %v587
      %v594 = vadd.f32 %v579, %v587
      %v595 = vadd.f32 %v580, %v587
      %v596 = vadd.f32 %v581, %v587
      %vm597 = vcmask 31744
      %598 = vst.msk [vmem:[%s175] sm:$0xff] %vm597, %v589
      %599 = vst.msk [vmem:[%s175 + $0x8] sm:$0xff] %vm597, %v590
      %600 = vst.msk [vmem:[%s175 + $0x10] sm:$0xff] %vm597, %v591
      %601 = vst.msk [vmem:[%s175 + $0x18] sm:$0xff] %vm597, %v592
      %602 = vst.msk [vmem:[%s175 + $0x20] sm:$0xff] %vm597, %v593
      %603 = vst.msk [vmem:[%s175 + $0x28] sm:$0xff] %vm597, %v594
      %604 = vst.msk [vmem:[%s175 + $0x30] sm:$0xff] %vm597, %v595
      %605 = vst.msk [vmem:[%s175 + $0x38] sm:$0xff] %vm597, %v596
      %p606 = scmp.lt.s32.totalorder %s14, 1
      %s607 = scalar_select %p606, %s14, 1
      %s608 = smul.addr %s607, 8
      %s609 = smul.addr %s608, 8
      %s610 = scalar_lea.vmem %s3, %s609
      // Predicated region
      $region33: #{tpu_custom_call.1} parent=31 // pred_check
        %p611 = pneg %p100
      $region34: #{tpu_custom_call.1} parent=31 // pred_check_branch
        %613 = sbr.rel (%p611) target = $region36
      $region35: #{tpu_custom_call.1} parent=31 // pred_region
        _
      $region36: #{tpu_custom_call.1} parent=31 // pred_fallthru
        _
    $region32: #{tpu_custom_call.1} parent=5 // pred_fallthru
      _
    %p614 = scmp.le.s32.totalorder 2, %s9
    // Predicated region
    $region37: #{tpu_custom_call.1} parent=5 // pred_check
      %p615 = pneg %p614
    $region38: #{tpu_custom_call.1} parent=5 // pred_check_branch
      %617 = sbr.rel (%p615) target = $region40
    $region39: #{tpu_custom_call.1} parent=5 // pred_region
      %s618 = ssub.s32 %s9, 2
      // Predicated region
      $region41: #{tpu_custom_call.1} parent=39 // pred_check
        %p619 = pneg %p106
      $region42: #{tpu_custom_call.1} parent=39 // pred_check_branch
        %621 = sbr.rel (%p619) target = $region44
      $region43: #{tpu_custom_call.1} parent=39 // pred_region
        %p622 = scmp.lt.s32.totalorder %s15, 1
        %s623 = scalar_select %p622, %s15, 1
        %s624 = smul.addr %s623, 8
        %s625 = smul.addr %s624, 8
        %s626 = scalar_lea.vmem %s3, %s625
      $region44: #{tpu_custom_call.1} parent=39 // pred_fallthru
        _
    $region40: #{tpu_custom_call.1} parent=5 // pred_fallthru
      _
  $region6: #{tpu_custom_call.1} parent=0 // loop_footer
    %s13 = sadd.s32 1, %s9
  $region7: #{tpu_custom_call.1} parent=0 // loop_footer_branch
    %8 = sbr.rel target = $region3
  $region8: #{tpu_custom_call.1} parent=0 // loop_exit
    _

</llo_original>
